<compile_context>
chip_gen: v5e
topology: v5e:2x2
jax: 0.10.0
libtpu: 0.0.40
codegen_flags: <defaults>
</compile_context>

<pallas_src>
import jax
import jax.numpy as jnp
from jax.experimental import pallas as pl
from jax.experimental.pallas import tpu as pltpu

_LANES = 128
_TINY_ELEMS = 16 * 1024                 # below this, skip the custom call entirely
_TARGET_BLOCK_BYTES = 4 * 1024 * 1024   # per-buffer block size (~4 MiB)
_VMEM_LIMIT_BYTES = 32 * 1024 * 1024    # explicit scoped-VMEM budget (in+out, double-buffered)


def _round_up(a, b):
    return ((a + b - 1) // b) * b


def _sublane_multiple(dtype):
    # Native packed tiling: (8,128) for 4-byte, (16,128) for 2-byte, (32,128) for 1-byte.
    itemsize = jnp.dtype(dtype).itemsize
    return max(8, 32 // max(itemsize, 1))


def _relu_exp_kernel(x_ref, o_ref):
    x = x_ref[...]
    # max() on the VPU, exp on the EUP; f32 math is a no-op for f32 inputs and
    # safe for bf16 on all generations. Cast once at the store.
    y = jnp.exp(jnp.maximum(x.astype(jnp.float32), 0.0))
    o_ref[...] = y.astype(o_ref.dtype)


def relu_exp(x):
    """Elementwise exp(relu(x)) for any shape via a lane-dense Pallas kernel."""
    orig_shape = x.shape

    # Integer inputs: promote (torch.exp on ints returns float).
    if not jnp.issubdtype(x.dtype, jnp.floating):
        x = x.astype(jnp.float32)
    dtype = x.dtype
    itemsize = jnp.dtype(dtype).itemsize

    n = x.size
    if n < _TINY_ELEMS:
        # Launch + layout overhead dominates at this size; let XLA fuse it.
        return jnp.exp(jnp.maximum(x, jnp.zeros((), dtype)))

    sub = _sublane_multiple(dtype)

    flat = x.reshape(-1)
    rows = _round_up(pl.cdiv(n, _LANES), sub)
    padded_n = rows * _LANES
    if padded_n != n:
        # Only ragged sizes pay the pad/slice copies; lane-aligned tensors are zero-copy.
        flat = jnp.pad(flat, (0, padded_n - n))
    x2d = flat.reshape(rows, _LANES)

    # Block sizing: up to ~_TARGET_BLOCK_BYTES per buffer, but never fewer than
    # 2 grid steps so v7x megacore ("parallel") gets both TensorCores busy.
    max_block_rows = max(sub, _TARGET_BLOCK_BYTES // (_LANES * itemsize))
    half_rows = _round_up(pl.cdiv(rows, 2), sub)
    block_rows = min(max_block_rows, max(half_rows, sub))
    grid = (pl.cdiv(rows, block_rows),)

    out2d = pl.pallas_call(
        _relu_exp_kernel,
        out_shape=jax.ShapeDtypeStruct((rows, _LANES), dtype),
        grid=grid,
        in_specs=[pl.BlockSpec((block_rows, _LANES), lambda i: (i, 0))],
        out_specs=pl.BlockSpec((block_rows, _LANES), lambda i: (i, 0)),
        compiler_params=pltpu.CompilerParams(
            dimension_semantics=("parallel",),
            vmem_limit_bytes=_VMEM_LIMIT_BYTES,
        ),
    )(x2d)

    out_flat = out2d.reshape(-1)
    if padded_n != n:
        out_flat = out_flat[:n]
    return out_flat.reshape(orig_shape)


if __name__ == "__main__":
    key = jax.random.PRNGKey(0)
    k1, k2, k3 = jax.random.split(key, 3)

    # Module's canonical small input (2,4,16,16) -> fast path (fused XLA elementwise).
    x_small = jax.random.normal(k1, (2, 4, 16, 16), dtype=jnp.float32)
    # Larger, lane-aligned input -> Pallas path, zero-copy wrapper, grid=(2,).
    x_big = jax.random.normal(k2, (8, 128, 256), dtype=jnp.float32)
    # Ragged size -> Pallas path with a padded tail and a masked final block.
    x_ragged = jax.random.normal(k3, (3, 7, 1000), dtype=jnp.float32)

    for x in (x_small, x_big, x_ragged):
        out = relu_exp(x)
        jax.block_until_ready(out)
        ref = jnp.exp(jnp.maximum(x, 0.0))
        assert out.shape == x.shape
        assert out.dtype == x.dtype
        assert jnp.allclose(out, ref, rtol=1e-6, atol=1e-6), "mismatch vs reference"

    print("KERNEL_OK")
</pallas_src>

<mosaic_0001>
module attributes {stable_mosaic.version = 11 : i64} {
  func.func @_relu_exp_kernel(%arg0: i32, %arg1: memref<1024x128xf32, #tpu.memory_space<vmem>>, %arg2: memref<1024x128xf32, #tpu.memory_space<vmem>>) attributes {dimension_semantics = [#tpu.dimension_semantics<parallel>], iteration_bounds = array<i64: 2>, scalar_prefetch = 0 : i64, scratch_operands = 0 : i64, tpu.core_type = #tpu.core_type<tc>, window_params = [{transform_indices = @transform_0, window_bounds = array<i64: 1024, 128>}, {transform_indices = @transform_1, window_bounds = array<i64: 1024, 128>}]} {
    %c0 = arith.constant 0 : index
    %c0_0 = arith.constant 0 : index
    %0 = vector.load %arg1[%c0, %c0_0] : memref<1024x128xf32, #tpu.memory_space<vmem>>, vector<1024x128xf32>
    %cst = arith.constant 0.000000e+00 : f32
    %1 = vector.broadcast %cst : f32 to vector<1024x128xf32>
    %2 = arith.maximumf %0, %1 : vector<1024x128xf32>
    %3 = math.exp %2 : vector<1024x128xf32>
    %c0_1 = arith.constant 0 : index
    %c0_2 = arith.constant 0 : index
    %4 = vector.load %arg2[%c0_1, %c0_2] : memref<1024x128xf32, #tpu.memory_space<vmem>>, vector<1024x128xf32>
    tpu.vector_store %arg2[%c0_1, %c0_2], %3 {strides = array<i32>} : memref<1024x128xf32, #tpu.memory_space<vmem>>, vector<1024x128xf32>,
    return
  }
  func.func @transform_0(%arg0: i32) -> (i32, i32) {
    %c0_i32 = arith.constant 0 : i32
    %c0_i32_0 = arith.constant 0 : i32
    return %arg0, %c0_i32 : i32, i32
  }
  func.func @transform_1(%arg0: i32) -> (i32, i32) {
    %c0_i32 = arith.constant 0 : i32
    %c0_i32_0 = arith.constant 0 : i32
    return %arg0, %c0_i32 : i32, i32
  }
}

</mosaic_0001>

<llo_original>
// kernel: tpu_custom_call.1
$region0: #{tpu_custom_call.1}
  #allocation0 [shape = 'u32[]', space=smem, size = 0x4, offset = 0x4, fixed_abs, tag = 'smem constant byte address 0x4 - core index']
  #allocation1 [shape = 'u32[72,128]{1,0:T(1,128)}', space=vmem, size = 0x9000, scoped, tag = 'internal scratch']
  %s0 = inlined_call_operand.hbm [shape: f32[2048,128], index: 0, kind: input, shape index: {}]
  %s1 = inlined_call_operand.hbm [shape: f32[2048,128], index: 1, kind: output, shape index: {}]
  %s2 = sld [smem:[#allocation0]]
  $region41: #{tpu_custom_call.1} parent=0
    _
  %s4 = ssub.s32 1, %s2
  %s5 = scalar_select 0, %s4, %s2
  $region1: #{tpu_custom_call.1} parent=0
    #allocation2 [shape = 'u8[1048576]{0}', space=vmem, size = 0x100000, scoped, tag = 'input window, operand 0']
    #allocation3 [shape = 's32[2]{0}', space=sflag, size = 0x8, scoped, tag = 'scoped memory for tpu_custom_call.1']
    #allocation4 [shape = 's32[2]{0}', space=sflag, size = 0x8, scoped, tag = 'scoped memory for tpu_custom_call.1']
    #allocation5 [shape = 'u8[1048576]{0}', space=vmem, size = 0x100000, scoped, tag = 'output window, operand 0']
    %6 = vsyncpa [#allocation3], 0
    %s7 = scalar_lea.sflag [#allocation3], 1
    %8 = vsyncpa %s7, 0
    %9 = vsyncpa [#allocation4], 0
    %s10 = scalar_lea.sflag [#allocation4], 1
    %11 = vsyncpa %s10, 0
    loop: start=0, step=1, limit=4
    $region2: #{tpu_custom_call.1} parent=1 // loop_pre_header
      _
    $region3: #{tpu_custom_call.1} parent=1 // loop_header
      %s13 = sphi 0, %s17
      %p14 = scmp.ge.s32.totalorder %s13, 4
      %s23 = sphi 0, %s25
      %s26 = sphi 0, %s23
      %s27 = sphi 0, %s26
      %s43 = sphi 0, %s27
      %s49 = sphi 0, %s51
      %s52 = sphi 0, %s49
      %s53 = sphi 0, %s52
      %s69 = sphi 0, %s53
    $region4: #{tpu_custom_call.1} parent=1 // loop_header_branch
      %16 = sbr.rel (%p14) target = $region8
    $region5: #{tpu_custom_call.1} parent=1 // loop_body
      %s18 = ssub.s32 %s13, 1
      %s19 = ssub.s32 %s13, 2
      %s20 = sadd.s32 %s13, 1
      %s21 = ssub.s32 %s13, %s20
      %p22 = scmp.eq.s32.totalorder %s21, 0
      %s24 = sadd.s32 %s23, 1
      %s25 = scalar_select %p22, %s23, %s24
      %p28 = pneg %p22
      %p29 = scmp.eq.s32.totalorder %s13, 1
      %p30 = por %p28, %p29
      %p31 = scmp.ne.s32.totalorder %s23, %s26
      %p32 = scmp.eq.s32.totalorder %s13, 0
      %p33 = por %p31, %p32
      %p34 = scmp.ne.s32.totalorder %s23, %s26
      %p35 = scmp.eq.s32.totalorder %s18, 1
      %p36 = por %p34, %p35
      %p37 = scmp.ne.s32.totalorder %s26, %s27
      %p38 = scmp.eq.s32.totalorder %s18, 0
      %p39 = por %p37, %p38
      %p40 = scmp.ne.s32.totalorder %s26, %s27
      %p41 = scmp.eq.s32.totalorder %s19, 1
      %p42 = por %p40, %p41
      %p44 = scmp.ne.s32.totalorder %s27, %s43
      %p45 = scmp.eq.s32.totalorder %s19, 0
      %p46 = por %p44, %p45
      %s47 = ssub.s32 %s13, %s20
      %p48 = scmp.eq.s32.totalorder %s47, 0
      %s50 = sadd.s32 %s49, 1
      %s51 = scalar_select %p48, %s49, %s50
      %p54 = pneg %p48
      %p55 = scmp.eq.s32.totalorder %s13, 1
      %p56 = por %p54, %p55
      %p57 = scmp.ne.s32.totalorder %s49, %s52
      %p58 = scmp.eq.s32.totalorder %s13, 0
      %p59 = por %p57, %p58
      %p60 = scmp.ne.s32.totalorder %s49, %s52
      %p61 = scmp.eq.s32.totalorder %s18, 1
      %p62 = por %p60, %p61
      %p63 = scmp.ne.s32.totalorder %s52, %s53
      %p64 = scmp.eq.s32.totalorder %s18, 0
      %p65 = por %p63, %p64
      %p66 = scmp.ne.s32.totalorder %s52, %s53
      %p67 = scmp.eq.s32.totalorder %s19, 1
      %p68 = por %p66, %p67
      %p70 = scmp.ne.s32.totalorder %s53, %s69
      %p71 = scmp.eq.s32.totalorder %s19, 0
      %p72 = por %p70, %p71
      %p73 = scmp.le.s32.totalorder 1, %s13
      %p74 = scmp.lt.s32.totalorder %s13, 3
      %p75 = pnand %p73, %p74
      %p76 = pneg %p75
      // Predicated region
      $region9: #{tpu_custom_call.1} parent=5 // pred_check
        _
      $region10: #{tpu_custom_call.1} parent=5 // pred_check_branch
        %78 = sbr.rel (%p75) target = $region12
      $region11: #{tpu_custom_call.1} parent=5 // pred_region
        %s79 = ssub.s32 %s13, 1
      $region12: #{tpu_custom_call.1} parent=5 // pred_fallthru
        _
      %p80 = scmp.lt.s32.totalorder %s13, 2
      // Predicated region
      $region13: #{tpu_custom_call.1} parent=5 // pred_check
        %p81 = pneg %p80
      $region14: #{tpu_custom_call.1} parent=5 // pred_check_branch
        %83 = sbr.rel (%p81) target = $region16
      $region15: #{tpu_custom_call.1} parent=5 // pred_region
        // Predicated region
        $region17: #{tpu_custom_call.1} parent=15 // pred_check
          %p84 = pneg %p33
        $region18: #{tpu_custom_call.1} parent=15 // pred_check_branch
          %86 = sbr.rel (%p84) target = $region20
        $region19: #{tpu_custom_call.1} parent=15 // pred_region
          %s87 = sand.u32 %s23, 1
          %s88 = scalar_lea.sflag [#allocation3], %s87
          %s89 = sand.u32 %s23, 1
          %s90 = smul.addr %s89, 1024
          %s91 = scalar_lea.vmem [#allocation2], %s90
          %s92 = smul.u32 128, %s13
          %94 = vsyncadd %s88, 0
          %s95 = smul.addr %s92, 8
          %s96 = scalar_lea.hbm %s0, %s95
          %s97 = sshll.u32 %s96, 4
          %s98 = int_to_ptr.hbm [resolvable:$true] %s97
          %s99 = sshll.u32 %s91, 4
          %s100 = int_to_ptr.vmem [resolvable:$true] %s99
          %105 = dma.hbm_to_vmem [thread:$0]  %s98, 16384, %s100, %s88, 128, 128, 8
        $region20: #{tpu_custom_call.1} parent=15 // pred_fallthru
          _
      $region16: #{tpu_custom_call.1} parent=5 // pred_fallthru
        _
      %p106 = scmp.le.s32.totalorder 1, %s13
      %p107 = scmp.lt.s32.totalorder %s13, 3
      %p108 = pnand %p106, %p107
      %p109 = pneg %p108
      // Predicated region
      $region21: #{tpu_custom_call.1} parent=5 // pred_check
        _
      $region22: #{tpu_custom_call.1} parent=5 // pred_check_branch
        %111 = sbr.rel (%p108) target = $region24
      $region23: #{tpu_custom_call.1} parent=5 // pred_region
        %s112 = ssub.s32 %s13, 1
        %s113 = sand.u32 %s26, 1
        %s114 = scalar_lea.sflag [#allocation3], %s113
        %s115 = sand.u32 %s26, 1
        %s116 = smul.addr %s115, 1024
        %s117 = scalar_lea.vmem [#allocation2], %s116
        // Predicated region
        $region25: #{tpu_custom_call.1} parent=23 // pred_check
          %p118 = pneg %p39
        $region26: #{tpu_custom_call.1} parent=23 // pred_check_branch
          %120 = sbr.rel (%p118) target = $region28
        $region27: #{tpu_custom_call.1} parent=23 // pred_region
          %122 = dma.done %s114, 16384
        $region28: #{tpu_custom_call.1} parent=23 // pred_fallthru
          _
        %s123 = sand.u32 %s26, 1
        %s124 = scalar_lea.sflag [#allocation3], %s123
        %s125 = sand.u32 %s26, 1
        %s126 = smul.addr %s125, 1024
        %s127 = scalar_lea.vmem [#allocation2], %s126
        %p128 = pneg %p39
        %p129 = pneg %p36
        %p130 = pneg %p65
        %p131 = pneg %p62
        %s132 = sand.u32 %s52, 1
        %s133 = scalar_lea.sflag [#allocation4], %s132
        %s134 = sand.u32 %s52, 1
        %s135 = smul.addr %s134, 1024
        %s136 = scalar_lea.vmem [#allocation5], %s135
        %s137 = smul.u32 128, %s18
        %s138 = smul.u32 128, %s18
        %v139 = vld [vmem:[%s117] sm:$0xff]
        %v140 = vld [vmem:[%s117 + $0x8] sm:$0xff]
        %v141 = vld [vmem:[%s117 + $0x10] sm:$0xff]
        %v142 = vld [vmem:[%s117 + $0x18] sm:$0xff]
        %v143 = vld [vmem:[%s117 + $0x20] sm:$0xff]
        %v144 = vld [vmem:[%s117 + $0x28] sm:$0xff]
        %v145 = vld [vmem:[%s117 + $0x30] sm:$0xff]
        %v146 = vld [vmem:[%s117 + $0x38] sm:$0xff]
        %v147 = vld [vmem:[%s117 + $0x40] sm:$0xff]
        %v148 = vld [vmem:[%s117 + $0x48] sm:$0xff]
        %v149 = vld [vmem:[%s117 + $0x50] sm:$0xff]
        %v150 = vld [vmem:[%s117 + $0x58] sm:$0xff]
        %v151 = vld [vmem:[%s117 + $0x60] sm:$0xff]
        %v152 = vld [vmem:[%s117 + $0x68] sm:$0xff]
        %v153 = vld [vmem:[%s117 + $0x70] sm:$0xff]
        %v154 = vld [vmem:[%s117 + $0x78] sm:$0xff]
        %v155 = vld [vmem:[%s117 + $0x80] sm:$0xff]
        %v156 = vld [vmem:[%s117 + $0x88] sm:$0xff]
        %v157 = vld [vmem:[%s117 + $0x90] sm:$0xff]
        %v158 = vld [vmem:[%s117 + $0x98] sm:$0xff]
        %v159 = vld [vmem:[%s117 + $0xa0] sm:$0xff]
        %v160 = vld [vmem:[%s117 + $0xa8] sm:$0xff]
        %v161 = vld [vmem:[%s117 + $0xb0] sm:$0xff]
        %v162 = vld [vmem:[%s117 + $0xb8] sm:$0xff]
        %v163 = vld [vmem:[%s117 + $0xc0] sm:$0xff]
        %v164 = vld [vmem:[%s117 + $0xc8] sm:$0xff]
        %v165 = vld [vmem:[%s117 + $0xd0] sm:$0xff]
        %v166 = vld [vmem:[%s117 + $0xd8] sm:$0xff]
        %v167 = vld [vmem:[%s117 + $0xe0] sm:$0xff]
        %v168 = vld [vmem:[%s117 + $0xe8] sm:$0xff]
        %v169 = vld [vmem:[%s117 + $0xf0] sm:$0xff]
        %v170 = vld [vmem:[%s117 + $0xf8] sm:$0xff]
        %v171 = vld [vmem:[%s117 + $0x100] sm:$0xff]
        %v172 = vld [vmem:[%s117 + $0x108] sm:$0xff]
        %v173 = vld [vmem:[%s117 + $0x110] sm:$0xff]
        %v174 = vld [vmem:[%s117 + $0x118] sm:$0xff]
        %v175 = vld [vmem:[%s117 + $0x120] sm:$0xff]
        %v176 = vld [vmem:[%s117 + $0x128] sm:$0xff]
        %v177 = vld [vmem:[%s117 + $0x130] sm:$0xff]
        %v178 = vld [vmem:[%s117 + $0x138] sm:$0xff]
        %v179 = vld [vmem:[%s117 + $0x140] sm:$0xff]
        %v180 = vld [vmem:[%s117 + $0x148] sm:$0xff]
        %v181 = vld [vmem:[%s117 + $0x150] sm:$0xff]
        %v182 = vld [vmem:[%s117 + $0x158] sm:$0xff]
        %v183 = vld [vmem:[%s117 + $0x160] sm:$0xff]
        %v184 = vld [vmem:[%s117 + $0x168] sm:$0xff]
        %v185 = vld [vmem:[%s117 + $0x170] sm:$0xff]
        %v186 = vld [vmem:[%s117 + $0x178] sm:$0xff]
        %v187 = vld [vmem:[%s117 + $0x180] sm:$0xff]
        %v188 = vld [vmem:[%s117 + $0x188] sm:$0xff]
        %v189 = vld [vmem:[%s117 + $0x190] sm:$0xff]
        %v190 = vld [vmem:[%s117 + $0x198] sm:$0xff]
        %v191 = vld [vmem:[%s117 + $0x1a0] sm:$0xff]
        %v192 = vld [vmem:[%s117 + $0x1a8] sm:$0xff]
        %v193 = vld [vmem:[%s117 + $0x1b0] sm:$0xff]
        %v194 = vld [vmem:[%s117 + $0x1b8] sm:$0xff]
        %v195 = vld [vmem:[%s117 + $0x1c0] sm:$0xff]
        %v196 = vld [vmem:[%s117 + $0x1c8] sm:$0xff]
        %v197 = vld [vmem:[%s117 + $0x1d0] sm:$0xff]
        %v198 = vld [vmem:[%s117 + $0x1d8] sm:$0xff]
        %v199 = vld [vmem:[%s117 + $0x1e0] sm:$0xff]
        %v200 = vld [vmem:[%s117 + $0x1e8] sm:$0xff]
        %v201 = vld [vmem:[%s117 + $0x1f0] sm:$0xff]
        %v202 = vld [vmem:[%s117 + $0x1f8] sm:$0xff]
        %v203 = vld [vmem:[%s117 + $0x200] sm:$0xff]
        %v204 = vld [vmem:[%s117 + $0x208] sm:$0xff]
        %v205 = vld [vmem:[%s117 + $0x210] sm:$0xff]
        %v206 = vld [vmem:[%s117 + $0x218] sm:$0xff]
        %v207 = vld [vmem:[%s117 + $0x220] sm:$0xff]
        %v208 = vld [vmem:[%s117 + $0x228] sm:$0xff]
        %v209 = vld [vmem:[%s117 + $0x230] sm:$0xff]
        %v210 = vld [vmem:[%s117 + $0x238] sm:$0xff]
        %v211 = vld [vmem:[%s117 + $0x240] sm:$0xff]
        %v212 = vld [vmem:[%s117 + $0x248] sm:$0xff]
        %v213 = vld [vmem:[%s117 + $0x250] sm:$0xff]
        %v214 = vld [vmem:[%s117 + $0x258] sm:$0xff]
        %v215 = vld [vmem:[%s117 + $0x260] sm:$0xff]
        %v216 = vld [vmem:[%s117 + $0x268] sm:$0xff]
        %v217 = vld [vmem:[%s117 + $0x270] sm:$0xff]
        %v218 = vld [vmem:[%s117 + $0x278] sm:$0xff]
        %v219 = vld [vmem:[%s117 + $0x280] sm:$0xff]
        %v220 = vld [vmem:[%s117 + $0x288] sm:$0xff]
        %v221 = vld [vmem:[%s117 + $0x290] sm:$0xff]
        %v222 = vld [vmem:[%s117 + $0x298] sm:$0xff]
        %v223 = vld [vmem:[%s117 + $0x2a0] sm:$0xff]
        %v224 = vld [vmem:[%s117 + $0x2a8] sm:$0xff]
        %v225 = vld [vmem:[%s117 + $0x2b0] sm:$0xff]
        %v226 = vld [vmem:[%s117 + $0x2b8] sm:$0xff]
        %v227 = vld [vmem:[%s117 + $0x2c0] sm:$0xff]
        %v228 = vld [vmem:[%s117 + $0x2c8] sm:$0xff]
        %v229 = vld [vmem:[%s117 + $0x2d0] sm:$0xff]
        %v230 = vld [vmem:[%s117 + $0x2d8] sm:$0xff]
        %v231 = vld [vmem:[%s117 + $0x2e0] sm:$0xff]
        %v232 = vld [vmem:[%s117 + $0x2e8] sm:$0xff]
        %v233 = vld [vmem:[%s117 + $0x2f0] sm:$0xff]
        %v234 = vld [vmem:[%s117 + $0x2f8] sm:$0xff]
        %v235 = vld [vmem:[%s117 + $0x300] sm:$0xff]
        %v236 = vld [vmem:[%s117 + $0x308] sm:$0xff]
        %v237 = vld [vmem:[%s117 + $0x310] sm:$0xff]
        %v238 = vld [vmem:[%s117 + $0x318] sm:$0xff]
        %v239 = vld [vmem:[%s117 + $0x320] sm:$0xff]
        %v240 = vld [vmem:[%s117 + $0x328] sm:$0xff]
        %v241 = vld [vmem:[%s117 + $0x330] sm:$0xff]
        %v242 = vld [vmem:[%s117 + $0x338] sm:$0xff]
        %v243 = vld [vmem:[%s117 + $0x340] sm:$0xff]
        %v244 = vld [vmem:[%s117 + $0x348] sm:$0xff]
        %v245 = vld [vmem:[%s117 + $0x350] sm:$0xff]
        %v246 = vld [vmem:[%s117 + $0x358] sm:$0xff]
        %v247 = vld [vmem:[%s117 + $0x360] sm:$0xff]
        %v248 = vld [vmem:[%s117 + $0x368] sm:$0xff]
        %v249 = vld [vmem:[%s117 + $0x370] sm:$0xff]
        %v250 = vld [vmem:[%s117 + $0x378] sm:$0xff]
        %v251 = vld [vmem:[%s117 + $0x380] sm:$0xff]
        %v252 = vld [vmem:[%s117 + $0x388] sm:$0xff]
        %v253 = vld [vmem:[%s117 + $0x390] sm:$0xff]
        %v254 = vld [vmem:[%s117 + $0x398] sm:$0xff]
        %v255 = vld [vmem:[%s117 + $0x3a0] sm:$0xff]
        %v256 = vld [vmem:[%s117 + $0x3a8] sm:$0xff]
        %v257 = vld [vmem:[%s117 + $0x3b0] sm:$0xff]
        %v258 = vld [vmem:[%s117 + $0x3b8] sm:$0xff]
        %v259 = vld [vmem:[%s117 + $0x3c0] sm:$0xff]
        %v260 = vld [vmem:[%s117 + $0x3c8] sm:$0xff]
        %v261 = vld [vmem:[%s117 + $0x3d0] sm:$0xff]
        %v262 = vld [vmem:[%s117 + $0x3d8] sm:$0xff]
        %v263 = vld [vmem:[%s117 + $0x3e0] sm:$0xff]
        %v264 = vld [vmem:[%s117 + $0x3e8] sm:$0xff]
        %v265 = vld [vmem:[%s117 + $0x3f0] sm:$0xff]
        %v266 = vld [vmem:[%s117 + $0x3f8] sm:$0xff]
        %v267 = vmax.f32 %v139, 0.0
        %v268 = vmax.f32 %v140, 0.0
        %v269 = vmax.f32 %v141, 0.0
        %v270 = vmax.f32 %v142, 0.0
        %v271 = vmax.f32 %v143, 0.0
        %v272 = vmax.f32 %v144, 0.0
        %v273 = vmax.f32 %v145, 0.0
        %v274 = vmax.f32 %v146, 0.0
        %v275 = vmax.f32 %v147, 0.0
        %v276 = vmax.f32 %v148, 0.0
        %v277 = vmax.f32 %v149, 0.0
        %v278 = vmax.f32 %v150, 0.0
        %v279 = vmax.f32 %v151, 0.0
        %v280 = vmax.f32 %v152, 0.0
        %v281 = vmax.f32 %v153, 0.0
        %v282 = vmax.f32 %v154, 0.0
        %v283 = vmax.f32 %v155, 0.0
        %v284 = vmax.f32 %v156, 0.0
        %v285 = vmax.f32 %v157, 0.0
        %v286 = vmax.f32 %v158, 0.0
        %v287 = vmax.f32 %v159, 0.0
        %v288 = vmax.f32 %v160, 0.0
        %v289 = vmax.f32 %v161, 0.0
        %v290 = vmax.f32 %v162, 0.0
        %v291 = vmax.f32 %v163, 0.0
        %v292 = vmax.f32 %v164, 0.0
        %v293 = vmax.f32 %v165, 0.0
        %v294 = vmax.f32 %v166, 0.0
        %v295 = vmax.f32 %v167, 0.0
        %v296 = vmax.f32 %v168, 0.0
        %v297 = vmax.f32 %v169, 0.0
        %v298 = vmax.f32 %v170, 0.0
        %v299 = vmax.f32 %v171, 0.0
        %v300 = vmax.f32 %v172, 0.0
        %v301 = vmax.f32 %v173, 0.0
        %v302 = vmax.f32 %v174, 0.0
        %v303 = vmax.f32 %v175, 0.0
        %v304 = vmax.f32 %v176, 0.0
        %v305 = vmax.f32 %v177, 0.0
        %v306 = vmax.f32 %v178, 0.0
        %v307 = vmax.f32 %v179, 0.0
        %v308 = vmax.f32 %v180, 0.0
        %v309 = vmax.f32 %v181, 0.0
        %v310 = vmax.f32 %v182, 0.0
        %v311 = vmax.f32 %v183, 0.0
        %v312 = vmax.f32 %v184, 0.0
        %v313 = vmax.f32 %v185, 0.0
        %v314 = vmax.f32 %v186, 0.0
        %v315 = vmax.f32 %v187, 0.0
        %v316 = vmax.f32 %v188, 0.0
        %v317 = vmax.f32 %v189, 0.0
        %v318 = vmax.f32 %v190, 0.0
        %v319 = vmax.f32 %v191, 0.0
        %v320 = vmax.f32 %v192, 0.0
        %v321 = vmax.f32 %v193, 0.0
        %v322 = vmax.f32 %v194, 0.0
        %v323 = vmax.f32 %v195, 0.0
        %v324 = vmax.f32 %v196, 0.0
        %v325 = vmax.f32 %v197, 0.0
        %v326 = vmax.f32 %v198, 0.0
        %v327 = vmax.f32 %v199, 0.0
        %v328 = vmax.f32 %v200, 0.0
        %v329 = vmax.f32 %v201, 0.0
        %v330 = vmax.f32 %v202, 0.0
        %v331 = vmax.f32 %v203, 0.0
        %v332 = vmax.f32 %v204, 0.0
        %v333 = vmax.f32 %v205, 0.0
        %v334 = vmax.f32 %v206, 0.0
        %v335 = vmax.f32 %v207, 0.0
        %v336 = vmax.f32 %v208, 0.0
        %v337 = vmax.f32 %v209, 0.0
        %v338 = vmax.f32 %v210, 0.0
        %v339 = vmax.f32 %v211, 0.0
        %v340 = vmax.f32 %v212, 0.0
        %v341 = vmax.f32 %v213, 0.0
        %v342 = vmax.f32 %v214, 0.0
        %v343 = vmax.f32 %v215, 0.0
        %v344 = vmax.f32 %v216, 0.0
        %v345 = vmax.f32 %v217, 0.0
        %v346 = vmax.f32 %v218, 0.0
        %v347 = vmax.f32 %v219, 0.0
        %v348 = vmax.f32 %v220, 0.0
        %v349 = vmax.f32 %v221, 0.0
        %v350 = vmax.f32 %v222, 0.0
        %v351 = vmax.f32 %v223, 0.0
        %v352 = vmax.f32 %v224, 0.0
        %v353 = vmax.f32 %v225, 0.0
        %v354 = vmax.f32 %v226, 0.0
        %v355 = vmax.f32 %v227, 0.0
        %v356 = vmax.f32 %v228, 0.0
        %v357 = vmax.f32 %v229, 0.0
        %v358 = vmax.f32 %v230, 0.0
        %v359 = vmax.f32 %v231, 0.0
        %v360 = vmax.f32 %v232, 0.0
        %v361 = vmax.f32 %v233, 0.0
        %v362 = vmax.f32 %v234, 0.0
        %v363 = vmax.f32 %v235, 0.0
        %v364 = vmax.f32 %v236, 0.0
        %v365 = vmax.f32 %v237, 0.0
        %v366 = vmax.f32 %v238, 0.0
        %v367 = vmax.f32 %v239, 0.0
        %v368 = vmax.f32 %v240, 0.0
        %v369 = vmax.f32 %v241, 0.0
        %v370 = vmax.f32 %v242, 0.0
        %v371 = vmax.f32 %v243, 0.0
        %v372 = vmax.f32 %v244, 0.0
        %v373 = vmax.f32 %v245, 0.0
        %v374 = vmax.f32 %v246, 0.0
        %v375 = vmax.f32 %v247, 0.0
        %v376 = vmax.f32 %v248, 0.0
        %v377 = vmax.f32 %v249, 0.0
        %v378 = vmax.f32 %v250, 0.0
        %v379 = vmax.f32 %v251, 0.0
        %v380 = vmax.f32 %v252, 0.0
        %v381 = vmax.f32 %v253, 0.0
        %v382 = vmax.f32 %v254, 0.0
        %v383 = vmax.f32 %v255, 0.0
        %v384 = vmax.f32 %v256, 0.0
        %v385 = vmax.f32 %v257, 0.0
        %v386 = vmax.f32 %v258, 0.0
        %v387 = vmax.f32 %v259, 0.0
        %v388 = vmax.f32 %v260, 0.0
        %v389 = vmax.f32 %v261, 0.0
        %v390 = vmax.f32 %v262, 0.0
        %v391 = vmax.f32 %v263, 0.0
        %v392 = vmax.f32 %v264, 0.0
        %v393 = vmax.f32 %v265, 0.0
        %v394 = vmax.f32 %v266, 0.0
        %v395 = vmul.f32 %v267, 1.442695
        %v396 = vpow.pop %v395
        %v397 = vmul.f32 %v268, 1.442695
        %v398 = vpow.pop %v397
        %v399 = vmul.f32 %v269, 1.442695
        %v400 = vpow.pop %v399
        %v401 = vmul.f32 %v270, 1.442695
        %v402 = vpow.pop %v401
        %v403 = vmul.f32 %v271, 1.442695
        %v404 = vpow.pop %v403
        %v405 = vmul.f32 %v272, 1.442695
        %v406 = vpow.pop %v405
        %v407 = vmul.f32 %v273, 1.442695
        %v408 = vpow.pop %v407
        %v409 = vmul.f32 %v274, 1.442695
        %v410 = vpow.pop %v409
        %v411 = vmul.f32 %v275, 1.442695
        %v412 = vpow.pop %v411
        %v413 = vmul.f32 %v276, 1.442695
        %v414 = vpow.pop %v413
        %v415 = vmul.f32 %v277, 1.442695
        %v416 = vpow.pop %v415
        %v417 = vmul.f32 %v278, 1.442695
        %v418 = vpow.pop %v417
        %v419 = vmul.f32 %v279, 1.442695
        %v420 = vpow.pop %v419
        %v421 = vmul.f32 %v280, 1.442695
        %v422 = vpow.pop %v421
        %v423 = vmul.f32 %v281, 1.442695
        %v424 = vpow.pop %v423
        %v425 = vmul.f32 %v282, 1.442695
        %v426 = vpow.pop %v425
        %v427 = vmul.f32 %v283, 1.442695
        %v428 = vpow.pop %v427
        %v429 = vmul.f32 %v284, 1.442695
        %v430 = vpow.pop %v429
        %v431 = vmul.f32 %v285, 1.442695
        %v432 = vpow.pop %v431
        %v433 = vmul.f32 %v286, 1.442695
        %v434 = vpow.pop %v433
        %v435 = vmul.f32 %v287, 1.442695
        %v436 = vpow.pop %v435
        %v437 = vmul.f32 %v288, 1.442695
        %v438 = vpow.pop %v437
        %v439 = vmul.f32 %v289, 1.442695
        %v440 = vpow.pop %v439
        %v441 = vmul.f32 %v290, 1.442695
        %v442 = vpow.pop %v441
        %v443 = vmul.f32 %v291, 1.442695
        %v444 = vpow.pop %v443
        %v445 = vmul.f32 %v292, 1.442695
        %v446 = vpow.pop %v445
        %v447 = vmul.f32 %v293, 1.442695
        %v448 = vpow.pop %v447
        %v449 = vmul.f32 %v294, 1.442695
        %v450 = vpow.pop %v449
        %v451 = vmul.f32 %v295, 1.442695
        %v452 = vpow.pop %v451
        %v453 = vmul.f32 %v296, 1.442695
        %v454 = vpow.pop %v453
        %v455 = vmul.f32 %v297, 1.442695
        %v456 = vpow.pop %v455
        %v457 = vmul.f32 %v298, 1.442695
        %v458 = vpow.pop %v457
        %v459 = vmul.f32 %v299, 1.442695
        %v460 = vpow.pop %v459
        %v461 = vmul.f32 %v300, 1.442695
        %v462 = vpow.pop %v461
        %v463 = vmul.f32 %v301, 1.442695
        %v464 = vpow.pop %v463
        %v465 = vmul.f32 %v302, 1.442695
        %v466 = vpow.pop %v465
        %v467 = vmul.f32 %v303, 1.442695
        %v468 = vpow.pop %v467
        %v469 = vmul.f32 %v304, 1.442695
        %v470 = vpow.pop %v469
        %v471 = vmul.f32 %v305, 1.442695
        %v472 = vpow.pop %v471
        %v473 = vmul.f32 %v306, 1.442695
        %v474 = vpow.pop %v473
        %v475 = vmul.f32 %v307, 1.442695
        %v476 = vpow.pop %v475
        %v477 = vmul.f32 %v308, 1.442695
        %v478 = vpow.pop %v477
        %v479 = vmul.f32 %v309, 1.442695
        %v480 = vpow.pop %v479
        %v481 = vmul.f32 %v310, 1.442695
        %v482 = vpow.pop %v481
        %v483 = vmul.f32 %v311, 1.442695
        %v484 = vpow.pop %v483
        %v485 = vmul.f32 %v312, 1.442695
        %v486 = vpow.pop %v485
        %v487 = vmul.f32 %v313, 1.442695
        %v488 = vpow.pop %v487
        %v489 = vmul.f32 %v314, 1.442695
        %v490 = vpow.pop %v489
        %v491 = vmul.f32 %v315, 1.442695
        %v492 = vpow.pop %v491
        %v493 = vmul.f32 %v316, 1.442695
        %v494 = vpow.pop %v493
        %v495 = vmul.f32 %v317, 1.442695
        %v496 = vpow.pop %v495
        %v497 = vmul.f32 %v318, 1.442695
        %v498 = vpow.pop %v497
        %v499 = vmul.f32 %v319, 1.442695
        %v500 = vpow.pop %v499
        %v501 = vmul.f32 %v320, 1.442695
        %v502 = vpow.pop %v501
        %v503 = vmul.f32 %v321, 1.442695
        %v504 = vpow.pop %v503
        %v505 = vmul.f32 %v322, 1.442695
        %v506 = vpow.pop %v505
        %v507 = vmul.f32 %v323, 1.442695
        %v508 = vpow.pop %v507
        %v509 = vmul.f32 %v324, 1.442695
        %v510 = vpow.pop %v509
        %v511 = vmul.f32 %v325, 1.442695
        %v512 = vpow.pop %v511
        %v513 = vmul.f32 %v326, 1.442695
        %v514 = vpow.pop %v513
        %v515 = vmul.f32 %v327, 1.442695
        %v516 = vpow.pop %v515
        %v517 = vmul.f32 %v328, 1.442695
        %v518 = vpow.pop %v517
        %v519 = vmul.f32 %v329, 1.442695
        %v520 = vpow.pop %v519
        %v521 = vmul.f32 %v330, 1.442695
        %v522 = vpow.pop %v521
        %v523 = vmul.f32 %v331, 1.442695
        %v524 = vpow.pop %v523
        %v525 = vmul.f32 %v332, 1.442695
        %v526 = vpow.pop %v525
        %v527 = vmul.f32 %v333, 1.442695
        %v528 = vpow.pop %v527
        %v529 = vmul.f32 %v334, 1.442695
        %v530 = vpow.pop %v529
        %v531 = vmul.f32 %v335, 1.442695
        %v532 = vpow.pop %v531
        %v533 = vmul.f32 %v336, 1.442695
        %v534 = vpow.pop %v533
        %v535 = vmul.f32 %v337, 1.442695
        %v536 = vpow.pop %v535
        %v537 = vmul.f32 %v338, 1.442695
        %v538 = vpow.pop %v537
        %v539 = vmul.f32 %v339, 1.442695
        %v540 = vpow.pop %v539
        %v541 = vmul.f32 %v340, 1.442695
        %v542 = vpow.pop %v541
        %v543 = vmul.f32 %v341, 1.442695
        %v544 = vpow.pop %v543
        %v545 = vmul.f32 %v342, 1.442695
        %v546 = vpow.pop %v545
        %v547 = vmul.f32 %v343, 1.442695
        %v548 = vpow.pop %v547
        %v549 = vmul.f32 %v344, 1.442695
        %v550 = vpow.pop %v549
        %v551 = vmul.f32 %v345, 1.442695
        %v552 = vpow.pop %v551
        %v553 = vmul.f32 %v346, 1.442695
        %v554 = vpow.pop %v553
        %v555 = vmul.f32 %v347, 1.442695
        %v556 = vpow.pop %v555
        %v557 = vmul.f32 %v348, 1.442695
        %v558 = vpow.pop %v557
        %v559 = vmul.f32 %v349, 1.442695
        %v560 = vpow.pop %v559
        %v561 = vmul.f32 %v350, 1.442695
        %v562 = vpow.pop %v561
        %v563 = vmul.f32 %v351, 1.442695
        %v564 = vpow.pop %v563
        %v565 = vmul.f32 %v352, 1.442695
        %v566 = vpow.pop %v565
        %v567 = vmul.f32 %v353, 1.442695
        %v568 = vpow.pop %v567
        %v569 = vmul.f32 %v354, 1.442695
        %v570 = vpow.pop %v569
        %v571 = vmul.f32 %v355, 1.442695
        %v572 = vpow.pop %v571
        %v573 = vmul.f32 %v356, 1.442695
        %v574 = vpow.pop %v573
        %v575 = vmul.f32 %v357, 1.442695
        %v576 = vpow.pop %v575
        %v577 = vmul.f32 %v358, 1.442695
        %v578 = vpow.pop %v577
        %v579 = vmul.f32 %v359, 1.442695
        %v580 = vpow.pop %v579
        %v581 = vmul.f32 %v360, 1.442695
        %v582 = vpow.pop %v581
        %v583 = vmul.f32 %v361, 1.442695
        %v584 = vpow.pop %v583
        %v585 = vmul.f32 %v362, 1.442695
        %v586 = vpow.pop %v585
        %v587 = vmul.f32 %v363, 1.442695
        %v588 = vpow.pop %v587
        %v589 = vmul.f32 %v364, 1.442695
        %v590 = vpow.pop %v589
        %v591 = vmul.f32 %v365, 1.442695
        %v592 = vpow.pop %v591
        %v593 = vmul.f32 %v366, 1.442695
        %v594 = vpow.pop %v593
        %v595 = vmul.f32 %v367, 1.442695
        %v596 = vpow.pop %v595
        %v597 = vmul.f32 %v368, 1.442695
        %v598 = vpow.pop %v597
        %v599 = vmul.f32 %v369, 1.442695
        %v600 = vpow.pop %v599
        %v601 = vmul.f32 %v370, 1.442695
        %v602 = vpow.pop %v601
        %v603 = vmul.f32 %v371, 1.442695
        %v604 = vpow.pop %v603
        %v605 = vmul.f32 %v372, 1.442695
        %v606 = vpow.pop %v605
        %v607 = vmul.f32 %v373, 1.442695
        %v608 = vpow.pop %v607
        %v609 = vmul.f32 %v374, 1.442695
        %v610 = vpow.pop %v609
        %v611 = vmul.f32 %v375, 1.442695
        %v612 = vpow.pop %v611
        %v613 = vmul.f32 %v376, 1.442695
        %v614 = vpow.pop %v613
        %v615 = vmul.f32 %v377, 1.442695
        %v616 = vpow.pop %v615
        %v617 = vmul.f32 %v378, 1.442695
        %v618 = vpow.pop %v617
        %v619 = vmul.f32 %v379, 1.442695
        %v620 = vpow.pop %v619
        %v621 = vmul.f32 %v380, 1.442695
        %v622 = vpow.pop %v621
        %v623 = vmul.f32 %v381, 1.442695
        %v624 = vpow.pop %v623
        %v625 = vmul.f32 %v382, 1.442695
        %v626 = vpow.pop %v625
        %v627 = vmul.f32 %v383, 1.442695
        %v628 = vpow.pop %v627
        %v629 = vmul.f32 %v384, 1.442695
        %v630 = vpow.pop %v629
        %v631 = vmul.f32 %v385, 1.442695
        %v632 = vpow.pop %v631
        %v633 = vmul.f32 %v386, 1.442695
        %v634 = vpow.pop %v633
        %v635 = vmul.f32 %v387, 1.442695
        %v636 = vpow.pop %v635
        %v637 = vmul.f32 %v388, 1.442695
        %v638 = vpow.pop %v637
        %v639 = vmul.f32 %v389, 1.442695
        %v640 = vpow.pop %v639
        %v641 = vmul.f32 %v390, 1.442695
        %v642 = vpow.pop %v641
        %v643 = vmul.f32 %v391, 1.442695
        %v644 = vpow.pop %v643
        %v645 = vmul.f32 %v392, 1.442695
        %v646 = vpow.pop %v645
        %v647 = vmul.f32 %v393, 1.442695
        %v648 = vpow.pop %v647
        %v649 = vmul.f32 %v394, 1.442695
        %v650 = vpow.pop %v649
        %651 = vst [vmem:[%s136] sm:$0xff] %v396
        %652 = vst [vmem:[%s136 + $0x8] sm:$0xff] %v398
        %653 = vst [vmem:[%s136 + $0x10] sm:$0xff] %v400
        %654 = vst [vmem:[%s136 + $0x18] sm:$0xff] %v402
        %655 = vst [vmem:[%s136 + $0x20] sm:$0xff] %v404
        %656 = vst [vmem:[%s136 + $0x28] sm:$0xff] %v406
        %657 = vst [vmem:[%s136 + $0x30] sm:$0xff] %v408
        %658 = vst [vmem:[%s136 + $0x38] sm:$0xff] %v410
        %659 = vst [vmem:[%s136 + $0x40] sm:$0xff] %v412
        %660 = vst [vmem:[%s136 + $0x48] sm:$0xff] %v414
        %661 = vst [vmem:[%s136 + $0x50] sm:$0xff] %v416
        %662 = vst [vmem:[%s136 + $0x58] sm:$0xff] %v418
        %663 = vst [vmem:[%s136 + $0x60] sm:$0xff] %v420
        %664 = vst [vmem:[%s136 + $0x68] sm:$0xff] %v422
        %665 = vst [vmem:[%s136 + $0x70] sm:$0xff] %v424
        %666 = vst [vmem:[%s136 + $0x78] sm:$0xff] %v426
        %667 = vst [vmem:[%s136 + $0x80] sm:$0xff] %v428
        %668 = vst [vmem:[%s136 + $0x88] sm:$0xff] %v430
        %669 = vst [vmem:[%s136 + $0x90] sm:$0xff] %v432
        %670 = vst [vmem:[%s136 + $0x98] sm:$0xff] %v434
        %671 = vst [vmem:[%s136 + $0xa0] sm:$0xff] %v436
        %672 = vst [vmem:[%s136 + $0xa8] sm:$0xff] %v438
        %673 = vst [vmem:[%s136 + $0xb0] sm:$0xff] %v440
        %674 = vst [vmem:[%s136 + $0xb8] sm:$0xff] %v442
        %675 = vst [vmem:[%s136 + $0xc0] sm:$0xff] %v444
        %676 = vst [vmem:[%s136 + $0xc8] sm:$0xff] %v446
        %677 = vst [vmem:[%s136 + $0xd0] sm:$0xff] %v448
        %678 = vst [vmem:[%s136 + $0xd8] sm:$0xff] %v450
        %679 = vst [vmem:[%s136 + $0xe0] sm:$0xff] %v452
        %680 = vst [vmem:[%s136 + $0xe8] sm:$0xff] %v454
        %681 = vst [vmem:[%s136 + $0xf0] sm:$0xff] %v456
        %682 = vst [vmem:[%s136 + $0xf8] sm:$0xff] %v458
        %683 = vst [vmem:[%s136 + $0x100] sm:$0xff] %v460
        %684 = vst [vmem:[%s136 + $0x108] sm:$0xff] %v462
        %685 = vst [vmem:[%s136 + $0x110] sm:$0xff] %v464
        %686 = vst [vmem:[%s136 + $0x118] sm:$0xff] %v466
        %687 = vst [vmem:[%s136 + $0x120] sm:$0xff] %v468
        %688 = vst [vmem:[%s136 + $0x128] sm:$0xff] %v470
        %689 = vst [vmem:[%s136 + $0x130] sm:$0xff] %v472
        %690 = vst [vmem:[%s136 + $0x138] sm:$0xff] %v474
        %691 = vst [vmem:[%s136 + $0x140] sm:$0xff] %v476
        %692 = vst [vmem:[%s136 + $0x148] sm:$0xff] %v478
        %693 = vst [vmem:[%s136 + $0x150] sm:$0xff] %v480
        %694 = vst [vmem:[%s136 + $0x158] sm:$0xff] %v482
        %695 = vst [vmem:[%s136 + $0x160] sm:$0xff] %v484
        %696 = vst [vmem:[%s136 + $0x168] sm:$0xff] %v486
        %697 = vst [vmem:[%s136 + $0x170] sm:$0xff] %v488
        %698 = vst [vmem:[%s136 + $0x178] sm:$0xff] %v490
        %699 = vst [vmem:[%s136 + $0x180] sm:$0xff] %v492
        %700 = vst [vmem:[%s136 + $0x188] sm:$0xff] %v494
        %701 = vst [vmem:[%s136 + $0x190] sm:$0xff] %v496
        %702 = vst [vmem:[%s136 + $0x198] sm:$0xff] %v498
        %703 = vst [vmem:[%s136 + $0x1a0] sm:$0xff] %v500
        %704 = vst [vmem:[%s136 + $0x1a8] sm:$0xff] %v502
        %705 = vst [vmem:[%s136 + $0x1b0] sm:$0xff] %v504
        %706 = vst [vmem:[%s136 + $0x1b8] sm:$0xff] %v506
        %707 = vst [vmem:[%s136 + $0x1c0] sm:$0xff] %v508
        %708 = vst [vmem:[%s136 + $0x1c8] sm:$0xff] %v510
        %709 = vst [vmem:[%s136 + $0x1d0] sm:$0xff] %v512
        %710 = vst [vmem:[%s136 + $0x1d8] sm:$0xff] %v514
        %711 = vst [vmem:[%s136 + $0x1e0] sm:$0xff] %v516
        %712 = vst [vmem:[%s136 + $0x1e8] sm:$0xff] %v518
        %713 = vst [vmem:[%s136 + $0x1f0] sm:$0xff] %v520
        %714 = vst [vmem:[%s136 + $0x1f8] sm:$0xff] %v522
        %715 = vst [vmem:[%s136 + $0x200] sm:$0xff] %v524
        %716 = vst [vmem:[%s136 + $0x208] sm:$0xff] %v526
        %717 = vst [vmem:[%s136 + $0x210] sm:$0xff] %v528
        %718 = vst [vmem:[%s136 + $0x218] sm:$0xff] %v530
        %719 = vst [vmem:[%s136 + $0x220] sm:$0xff] %v532
        %720 = vst [vmem:[%s136 + $0x228] sm:$0xff] %v534
        %721 = vst [vmem:[%s136 + $0x230] sm:$0xff] %v536
        %722 = vst [vmem:[%s136 + $0x238] sm:$0xff] %v538
        %723 = vst [vmem:[%s136 + $0x240] sm:$0xff] %v540
        %724 = vst [vmem:[%s136 + $0x248] sm:$0xff] %v542
        %725 = vst [vmem:[%s136 + $0x250] sm:$0xff] %v544
        %726 = vst [vmem:[%s136 + $0x258] sm:$0xff] %v546
        %727 = vst [vmem:[%s136 + $0x260] sm:$0xff] %v548
        %728 = vst [vmem:[%s136 + $0x268] sm:$0xff] %v550
        %729 = vst [vmem:[%s136 + $0x270] sm:$0xff] %v552
        %730 = vst [vmem:[%s136 + $0x278] sm:$0xff] %v554
        %731 = vst [vmem:[%s136 + $0x280] sm:$0xff] %v556
        %732 = vst [vmem:[%s136 + $0x288] sm:$0xff] %v558
        %733 = vst [vmem:[%s136 + $0x290] sm:$0xff] %v560
        %734 = vst [vmem:[%s136 + $0x298] sm:$0xff] %v562
        %735 = vst [vmem:[%s136 + $0x2a0] sm:$0xff] %v564
        %736 = vst [vmem:[%s136 + $0x2a8] sm:$0xff] %v566
        %737 = vst [vmem:[%s136 + $0x2b0] sm:$0xff] %v568
        %738 = vst [vmem:[%s136 + $0x2b8] sm:$0xff] %v570
        %739 = vst [vmem:[%s136 + $0x2c0] sm:$0xff] %v572
        %740 = vst [vmem:[%s136 + $0x2c8] sm:$0xff] %v574
        %741 = vst [vmem:[%s136 + $0x2d0] sm:$0xff] %v576
        %742 = vst [vmem:[%s136 + $0x2d8] sm:$0xff] %v578
        %743 = vst [vmem:[%s136 + $0x2e0] sm:$0xff] %v580
        %744 = vst [vmem:[%s136 + $0x2e8] sm:$0xff] %v582
        %745 = vst [vmem:[%s136 + $0x2f0] sm:$0xff] %v584
        %746 = vst [vmem:[%s136 + $0x2f8] sm:$0xff] %v586
        %747 = vst [vmem:[%s136 + $0x300] sm:$0xff] %v588
        %748 = vst [vmem:[%s136 + $0x308] sm:$0xff] %v590
        %749 = vst [vmem:[%s136 + $0x310] sm:$0xff] %v592
        %750 = vst [vmem:[%s136 + $0x318] sm:$0xff] %v594
        %751 = vst [vmem:[%s136 + $0x320] sm:$0xff] %v596
        %752 = vst [vmem:[%s136 + $0x328] sm:$0xff] %v598
        %753 = vst [vmem:[%s136 + $0x330] sm:$0xff] %v600
        %754 = vst [vmem:[%s136 + $0x338] sm:$0xff] %v602
        %755 = vst [vmem:[%s136 + $0x340] sm:$0xff] %v604
        %756 = vst [vmem:[%s136 + $0x348] sm:$0xff] %v606
        %757 = vst [vmem:[%s136 + $0x350] sm:$0xff] %v608
        %758 = vst [vmem:[%s136 + $0x358] sm:$0xff] %v610
        %759 = vst [vmem:[%s136 + $0x360] sm:$0xff] %v612
        %760 = vst [vmem:[%s136 + $0x368] sm:$0xff] %v614
        %761 = vst [vmem:[%s136 + $0x370] sm:$0xff] %v616
        %762 = vst [vmem:[%s136 + $0x378] sm:$0xff] %v618
        %763 = vst [vmem:[%s136 + $0x380] sm:$0xff] %v620
        %764 = vst [vmem:[%s136 + $0x388] sm:$0xff] %v622
        %765 = vst [vmem:[%s136 + $0x390] sm:$0xff] %v624
        %766 = vst [vmem:[%s136 + $0x398] sm:$0xff] %v626
        %767 = vst [vmem:[%s136 + $0x3a0] sm:$0xff] %v628
        %768 = vst [vmem:[%s136 + $0x3a8] sm:$0xff] %v630
        %769 = vst [vmem:[%s136 + $0x3b0] sm:$0xff] %v632
        %770 = vst [vmem:[%s136 + $0x3b8] sm:$0xff] %v634
        %771 = vst [vmem:[%s136 + $0x3c0] sm:$0xff] %v636
        %772 = vst [vmem:[%s136 + $0x3c8] sm:$0xff] %v638
        %773 = vst [vmem:[%s136 + $0x3d0] sm:$0xff] %v640
        %774 = vst [vmem:[%s136 + $0x3d8] sm:$0xff] %v642
        %775 = vst [vmem:[%s136 + $0x3e0] sm:$0xff] %v644
        %776 = vst [vmem:[%s136 + $0x3e8] sm:$0xff] %v646
        %777 = vst [vmem:[%s136 + $0x3f0] sm:$0xff] %v648
        %778 = vst [vmem:[%s136 + $0x3f8] sm:$0xff] %v650
        %s779 = sand.u32 %s52, 1
        %s780 = scalar_lea.sflag [#allocation4], %s779
        %s781 = sand.u32 %s52, 1
        %s782 = smul.addr %s781, 1024
        %s783 = scalar_lea.vmem [#allocation5], %s782
        // Predicated region
        $region29: #{tpu_custom_call.1} parent=23 // pred_check
          %p784 = pneg %p62
        $region30: #{tpu_custom_call.1} parent=23 // pred_check_branch
          %786 = sbr.rel (%p784) target = $region32
        $region31: #{tpu_custom_call.1} parent=23 // pred_region
          %s787 = smul.u32 128, %s18
          %789 = vsyncadd %s780, 0
          %s790 = smul.addr %s787, 8
          %s791 = scalar_lea.hbm %s1, %s790
          %s792 = sshll.u32 %s783, 4
          %s793 = int_to_ptr.vmem [resolvable:$true] %s792
          %s794 = sshll.u32 %s791, 4
          %s795 = int_to_ptr.hbm [resolvable:$true] %s794
          %800 = dma.vmem_to_hbm [thread:$0]  %s793, 16384, %s795, %s780, 128, 128, 8
        $region32: #{tpu_custom_call.1} parent=23 // pred_fallthru
          _
      $region24: #{tpu_custom_call.1} parent=5 // pred_fallthru
        _
      %p801 = scmp.le.s32.totalorder 2, %s13
      // Predicated region
      $region33: #{tpu_custom_call.1} parent=5 // pred_check
        %p802 = pneg %p801
      $region34: #{tpu_custom_call.1} parent=5 // pred_check_branch
        %804 = sbr.rel (%p802) target = $region36
      $region35: #{tpu_custom_call.1} parent=5 // pred_region
        %s805 = ssub.s32 %s13, 2
        // Predicated region
        $region37: #{tpu_custom_call.1} parent=35 // pred_check
          %p806 = pneg %p68
        $region38: #{tpu_custom_call.1} parent=35 // pred_check_branch
          %808 = sbr.rel (%p806) target = $region40
        $region39: #{tpu_custom_call.1} parent=35 // pred_region
          %s809 = sand.u32 %s53, 1
          %s810 = scalar_lea.sflag [#allocation4], %s809
          %s811 = sand.u32 %s53, 1
          %s812 = smul.addr %s811, 1024
          %s813 = scalar_lea.vmem [#allocation5], %s812
          %815 = dma.done %s810, 16384
        $region40: #{tpu_custom_call.1} parent=35 // pred_fallthru
          _
      $region36: #{tpu_custom_call.1} parent=5 // pred_fallthru
        _
    $region6: #{tpu_custom_call.1} parent=1 // loop_footer
      %s17 = sadd.s32 1, %s13
    $region7: #{tpu_custom_call.1} parent=1 // loop_footer_branch
      %12 = sbr.rel target = $region3
    $region8: #{tpu_custom_call.1} parent=1 // loop_exit
      _
    %816 = vsyncpa [#allocation3], 1
    %s817 = scalar_lea.sflag [#allocation3], 1
    %818 = vsyncpa %s817, 1
    %819 = vsyncpa [#allocation4], 1
    %s820 = scalar_lea.sflag [#allocation4], 1
    %821 = vsyncpa %s820, 1

</llo_original>
